<compile_context>
chip_gen: v7x
topology: tpu7x:2x2x1
jax: 0.10.0
libtpu: 0.0.40
codegen_flags: <defaults>
</compile_context>

<pallas_src>
import jax
import jax.numpy as jnp
from jax import lax
from jax.experimental import pallas as pl
from jax.experimental.pallas import tpu as pltpu

# ------------------------- configuration (small, synthetic) -------------------------
B = 4                      # batch
N_CLASSES = 16             # args['n_classes']
MODALITY_SIZE = {"audio": 32, "visual": 32}   # args['modality_size']
ALL_NUMS = 2               # len(encoder_result) - 1  (audio + visual)

AUDIO_SHAPE = (B, 1, 16, 16)        # spectrogram [B, 1, F, T]
VISUAL_SHAPE = (B, 2, 3, 16, 16)    # video       [B, T, 3, H, W]

DIN_A = 1 * 16 * 16
DIN_V = 3 * 2 * 16 * 16
DIN = DIN_A + DIN_V                 # 1792
DA = MODALITY_SIZE["audio"]
DV = MODALITY_SIZE["visual"]
DFEAT = DA + DV                     # 64

HEAD_W = 3 * N_CLASSES              # [ua | uv | out] = 48
SLAB_W = 128                        # lane-dense output slab
PAD_W = SLAB_W - DFEAT - HEAD_W     # 16


# ----------------------------------- kernel -----------------------------------------
def _classifier_kernel(x_ref, wenc_ref, benc_ref, wfus_ref, bfus_ref, slab_ref):
    # encoder stand-ins, fused block-diagonally: one MXU chain -> [fa | fv] (B, 64)
    feats = jnp.dot(x_ref[...], wenc_ref[...],
                    preferred_element_type=jnp.float32) + benc_ref[...]
    # ConcatFusion_N.fc_out + unimodality_calculate in ONE matmul -> [ua | uv | out]
    heads = jnp.dot(feats, wfus_ref[...],
                    preferred_element_type=jnp.float32) + bfus_ref[...]
    # single lane-dense (B, 128) store: [feats(64) | heads(48) | pad(16)]
    pad = jnp.zeros((feats.shape[0], PAD_W), jnp.float32)
    slab_ref[...] = jnp.concatenate([feats, heads, pad], axis=1)


# --------------------------------- parameters ----------------------------------------
def init_params(key):
    ka, kab, kv, kvb, kw, kb = jax.random.split(key, 6)
    return {
        "W_enc_a": 0.05 * jax.random.normal(ka, (DIN_A, DA), jnp.float32),
        "b_enc_a": 0.05 * jax.random.normal(kab, (1, DA), jnp.float32),
        "W_enc_v": 0.05 * jax.random.normal(kv, (DIN_V, DV), jnp.float32),
        "b_enc_v": 0.05 * jax.random.normal(kvb, (1, DV), jnp.float32),
        # ConcatFusion_N.fc_out : Linear(DA + DV, N_CLASSES)
        "W_fc": 0.1 * jax.random.normal(kw, (N_CLASSES, DA + DV), jnp.float32),
        "b_fc": 0.1 * jax.random.normal(kb, (1, N_CLASSES), jnp.float32),
    }


def fuse_params(params):
    """Build the block-diagonal fused weights once (not per forward call)."""
    # encoder block-diag: [xa | xv] @ W_enc_blk == [fa | fv]
    w_enc = jnp.zeros((DIN, DFEAT), jnp.float32)
    w_enc = w_enc.at[:DIN_A, :DA].set(params["W_enc_a"])
    w_enc = w_enc.at[DIN_A:, DA:].set(params["W_enc_v"])
    b_enc = jnp.concatenate([params["b_enc_a"], params["b_enc_v"]], axis=1)

    # fusion / unimodal heads: feats @ W_fus == [ua_nobias | uv_nobias | out_nobias]
    wfa_t = params["W_fc"][:, :DA].T            # (DA, C)
    wfv_t = params["W_fc"][:, DA:].T            # (DV, C)
    w_fus = jnp.zeros((DFEAT, HEAD_W), jnp.float32)
    w_fus = w_fus.at[:DA, 0:N_CLASSES].set(wfa_t)                    # ua block
    w_fus = w_fus.at[DA:, N_CLASSES:2 * N_CLASSES].set(wfv_t)        # uv block
    w_fus = w_fus.at[:DA, 2 * N_CLASSES:].set(wfa_t)                 # out block (fa part)
    w_fus = w_fus.at[DA:, 2 * N_CLASSES:].set(wfv_t)                 # out block (fv part)
    half_b = params["b_fc"] * (1.0 / ALL_NUMS)
    b_fus = jnp.concatenate([half_b, half_b, params["b_fc"]], axis=1)

    return {
        "w_enc": w_enc.astype(jnp.bfloat16),    # bf16 operands, f32 accumulation
        "b_enc": b_enc,
        "w_fus": w_fus,
        "b_fus": b_fus,
    }


# --------------------------------- wrapper -------------------------------------------
def base_classifier_forward(batch, fused, padding=()):
    """Mirrors BaseClassifierModel.forward for fusion == 'concat'."""
    xa = batch["audio"].astype(jnp.float32)
    xv = batch["visual"].astype(jnp.float32)
    if "audio" in padding:
        xa = jnp.zeros_like(xa)
    if "visual" in padding:
        xv = jnp.zeros_like(xv)

    # glue: NCHW-style flattening (visual gets the resnet_process permute first)
    xa_flat = xa.reshape(B, -1)                                   # [B, 1*F*T]
    xv_flat = jnp.transpose(xv, (0, 2, 1, 3, 4)).reshape(B, -1)   # [B, 3*T*H*W]
    x_cat = jnp.concatenate([xa_flat, xv_flat], axis=1).astype(jnp.bfloat16)

    vmem = pl.BlockSpec(memory_space=pltpu.MemorySpace.VMEM)
    slab = pl.pallas_call(
        _classifier_kernel,
        out_shape=jax.ShapeDtypeStruct((B, SLAB_W), jnp.float32),
        in_specs=[vmem] * 5,
        out_specs=vmem,
    )(x_cat, fused["w_enc"], fused["b_enc"], fused["w_fus"], fused["b_fus"])

    feat_a = slab[:, :DA]
    feat_v = slab[:, DA:DFEAT]
    ua = slab[:, DFEAT:DFEAT + N_CLASSES]
    uv = slab[:, DFEAT + N_CLASSES:DFEAT + 2 * N_CLASSES]
    out = slab[:, DFEAT + 2 * N_CLASSES:DFEAT + 3 * N_CLASSES]

    # argmax(softmax(x)) == argmax(x): compute predictions directly on the logits
    prediction = {
        "output": jnp.argmax(out, axis=1).astype(jnp.int32),
        "audio": jnp.argmax(ua, axis=1).astype(jnp.int32),
        "visual": jnp.argmax(uv, axis=1).astype(jnp.int32),
    }
    encoder_result = {"audio": feat_a, "visual": feat_v, "output": out}
    unimodal_result = {"output": out, "audio": ua, "visual": uv}
    return encoder_result, unimodal_result, prediction


# --------------------------------- reference ------------------------------------------
def _mm(a, b):
    return jnp.dot(a, b, preferred_element_type=jnp.float32,
                   precision=lax.Precision.HIGHEST)


def reference_forward(batch, params, padding=()):
    xa = batch["audio"].astype(jnp.float32)
    xv = batch["visual"].astype(jnp.float32)
    if "audio" in padding:
        xa = jnp.zeros_like(xa)
    if "visual" in padding:
        xv = jnp.zeros_like(xv)
    xa_flat = xa.reshape(B, -1)
    xv_flat = jnp.transpose(xv, (0, 2, 1, 3, 4)).reshape(B, -1)
    # encoder stand-ins: same bf16-operand / f32-accumulation math as the kernel
    fa = _mm(xa_flat.astype(jnp.bfloat16),
             params["W_enc_a"].astype(jnp.bfloat16)) + params["b_enc_a"]
    fv = _mm(xv_flat.astype(jnp.bfloat16),
             params["W_enc_v"].astype(jnp.bfloat16)) + params["b_enc_v"]
    out = _mm(jnp.concatenate([fa, fv], axis=1), params["W_fc"].T) + params["b_fc"]
    ua = _mm(fa, params["W_fc"][:, :DA].T) + params["b_fc"] / ALL_NUMS
    uv = _mm(fv, params["W_fc"][:, DA:].T) + params["b_fc"] / ALL_NUMS
    preds = {k: jnp.argmax(jax.nn.softmax(v, axis=1), axis=1).astype(jnp.int32)
             for k, v in {"output": out, "audio": ua, "visual": uv}.items()}
    return ({"audio": fa, "visual": fv, "output": out},
            {"output": out, "audio": ua, "visual": uv},
            preds)


# ----------------------------------- main ---------------------------------------------
if __name__ == "__main__":
    key = jax.random.PRNGKey(0)
    k_in_a, k_in_v, k_par = jax.random.split(key, 3)
    batch = {
        "audio": jax.random.normal(k_in_a, AUDIO_SHAPE, jnp.float32),
        "visual": jax.random.normal(k_in_v, VISUAL_SHAPE, jnp.float32),
    }
    params = init_params(k_par)
    fused = fuse_params(params)   # built once, reused across forward calls

    enc, uni, pred = base_classifier_forward(batch, fused)
    jax.block_until_ready(uni["output"])

    enc_r, uni_r, pred_r = reference_forward(batch, params)
    for k in ("output", "audio", "visual"):
        assert jnp.allclose(uni[k], uni_r[k], rtol=2e-3, atol=2e-3), k
        assert jnp.array_equal(pred[k], pred_r[k]), k
    for k in ("audio", "visual"):
        assert jnp.allclose(enc[k], enc_r[k], rtol=2e-3, atol=2e-3), k

    print("KERNEL_OK")
</pallas_src>

<mosaic_0001>
module attributes {stable_mosaic.version = 11 : i64} {
  func.func @_classifier_kernel(%arg0: memref<4x1792xbf16, #tpu.memory_space<vmem>>, %arg1: memref<1792x64xbf16, #tpu.memory_space<vmem>>, %arg2: memref<1x64xf32, #tpu.memory_space<vmem>>, %arg3: memref<64x48xf32, #tpu.memory_space<vmem>>, %arg4: memref<1x48xf32, #tpu.memory_space<vmem>>, %arg5: memref<4x128xf32, #tpu.memory_space<vmem>>) attributes {dimension_semantics = [], scalar_prefetch = 0 : i64, scratch_operands = 0 : i64, tpu.core_type = #tpu.core_type<tc>} {
    %c0 = arith.constant 0 : index
    %c0_0 = arith.constant 0 : index
    %0 = vector.load %arg0[%c0, %c0_0] : memref<4x1792xbf16, #tpu.memory_space<vmem>>, vector<4x1792xbf16>
    %c0_1 = arith.constant 0 : index
    %c0_2 = arith.constant 0 : index
    %1 = vector.load %arg1[%c0_1, %c0_2] : memref<1792x64xbf16, #tpu.memory_space<vmem>>, vector<1792x64xbf16>
    %cst = arith.constant dense<0.000000e+00> : vector<4x64xf32>
    %2 = tpu.matmul %0, %1, %cst {dimension_numbers = #tpu.dot_dimension_numbers<[1], [0], [0], [1], [0, 0, 1, 1], [], []>} : vector<4x1792xbf16>, vector<1792x64xbf16>, vector<4x64xf32> -> vector<4x64xf32>
    %c0_3 = arith.constant 0 : index
    %c0_4 = arith.constant 0 : index
    %3 = vector.load %arg2[%c0_3, %c0_4] : memref<1x64xf32, #tpu.memory_space<vmem>>, vector<1x64xf32>
    %4 = vector.broadcast %3 : vector<1x64xf32> to vector<4x64xf32>
    %5 = arith.addf %2, %4 : vector<4x64xf32>
    %c0_5 = arith.constant 0 : index
    %c0_6 = arith.constant 0 : index
    %6 = vector.load %arg3[%c0_5, %c0_6] : memref<64x48xf32, #tpu.memory_space<vmem>>, vector<64x48xf32>
    %cst_7 = arith.constant dense<0.000000e+00> : vector<4x48xf32>
    %7 = tpu.matmul %5, %6, %cst_7 {dimension_numbers = #tpu.dot_dimension_numbers<[1], [0], [0], [1], [0, 0, 1, 1], [], []>} : vector<4x64xf32>, vector<64x48xf32>, vector<4x48xf32> -> vector<4x48xf32>
    %c0_8 = arith.constant 0 : index
    %c0_9 = arith.constant 0 : index
    %8 = vector.load %arg4[%c0_8, %c0_9] : memref<1x48xf32, #tpu.memory_space<vmem>>, vector<1x48xf32>
    %9 = vector.broadcast %8 : vector<1x48xf32> to vector<4x48xf32>
    %10 = arith.addf %7, %9 : vector<4x48xf32>
    %cst_10 = arith.constant 0.000000e+00 : f32
    %11 = vector.broadcast %cst_10 : f32 to vector<4x16xf32>
    %12 = tpu.concatenate %5, %10, %11 in 1 : vector<4x64xf32>, vector<4x48xf32>, vector<4x16xf32> -> vector<4x128xf32>
    %c0_11 = arith.constant 0 : index
    %c0_12 = arith.constant 0 : index
    %13 = vector.load %arg5[%c0_11, %c0_12] : memref<4x128xf32, #tpu.memory_space<vmem>>, vector<4x128xf32>
    tpu.vector_store %arg5[%c0_11, %c0_12], %12 {strides = array<i32>} : memref<4x128xf32, #tpu.memory_space<vmem>>, vector<4x128xf32>,
    return
  }
}

</mosaic_0001>

<llo_original>
// kernel: tpu_custom_call.1
$region0: #{tpu_custom_call.1}
  #allocation0 [shape = 'u32[]', space=smem, size = 0x4, offset = 0x4, fixed_abs, tag = 'smem constant byte address 0x4 - core index']
  #allocation1 [shape = 'u32[144,128]{1,0:T(1,128)}', space=vmem, size = 0x12000, scoped, tag = 'internal scratch']
  %s0 = inlined_call_operand.vmem [shape: bf16[4,1792], index: 0, kind: input, shape index: {}]
  %s1 = inlined_call_operand.vmem [shape: bf16[1792,64], index: 1, kind: input, shape index: {}]
  %s2 = inlined_call_operand.vmem [shape: f32[1,64], index: 2, kind: input, shape index: {}]
  %s3 = inlined_call_operand.vmem [shape: f32[64,48], index: 3, kind: input, shape index: {}]
  %s4 = inlined_call_operand.vmem [shape: f32[1,48], index: 4, kind: input, shape index: {}]
  %s5 = inlined_call_operand.hbm [shape: f32[4,128], index: 5, kind: output, shape index: {}]
  %s6 = sld [smem:[#allocation0]]
  $region30: #{tpu_custom_call.1} parent=0
    _
  %s8 = ssub.s32 1, %s6
  %s9 = scalar_select 0, %s8, %s6
  $region1: #{tpu_custom_call.1} parent=0
    #allocation2 [shape = 'u8[2048]{0}', space=vmem, size = 0x800, scoped, tag = 'output window, operand 0, single buffered']
    #allocation3 [shape = 's32[1]{0}', space=sflag, size = 0x4, scoped, tag = 'scoped memory for tpu_custom_call.1']
    %10 = vsyncpa [#allocation3], 0
    // Predicated region
    $region2: #{tpu_custom_call.1} parent=1 // pred_check
      _
    $region3: #{tpu_custom_call.1} parent=1 // pred_check_branch
      %12 = sbr.rel (0) target = $region5
    $region4: #{tpu_custom_call.1} parent=1 // pred_region
      _
    $region5: #{tpu_custom_call.1} parent=1 // pred_fallthru
      _
    // Predicated region
    $region6: #{tpu_custom_call.1} parent=1 // pred_check
      _
    $region7: #{tpu_custom_call.1} parent=1 // pred_check_branch
      %14 = sbr.rel (0) target = $region9
    $region8: #{tpu_custom_call.1} parent=1 // pred_region
      _
    $region9: #{tpu_custom_call.1} parent=1 // pred_fallthru
      _
    // Predicated region
    $region10: #{tpu_custom_call.1} parent=1 // pred_check
      _
    $region11: #{tpu_custom_call.1} parent=1 // pred_check_branch
      %16 = sbr.rel (0) target = $region13
    $region12: #{tpu_custom_call.1} parent=1 // pred_region
      _
    $region13: #{tpu_custom_call.1} parent=1 // pred_fallthru
      _
    // Predicated region
    $region14: #{tpu_custom_call.1} parent=1 // pred_check
      _
    $region15: #{tpu_custom_call.1} parent=1 // pred_check_branch
      %18 = sbr.rel (0) target = $region17
    $region16: #{tpu_custom_call.1} parent=1 // pred_region
      _
    $region17: #{tpu_custom_call.1} parent=1 // pred_fallthru
      _
    // Predicated region
    $region18: #{tpu_custom_call.1} parent=1 // pred_check
      _
    $region19: #{tpu_custom_call.1} parent=1 // pred_check_branch
      %20 = sbr.rel (0) target = $region21
    $region20: #{tpu_custom_call.1} parent=1 // pred_region
      _
    $region21: #{tpu_custom_call.1} parent=1 // pred_fallthru
      _
    %v22 = vld [vmem:[%s0] sm:$0xff]
    %v23 = vld [vmem:[%s0 + $0x8] sm:$0xff]
    %v24 = vld [vmem:[%s0 + $0x10] sm:$0xff]
    %v25 = vld [vmem:[%s0 + $0x18] sm:$0xf]
    %v26 = vld [vmem:[%s1] sm:$0xf]
    %v27 = vld [vmem:[%s1 + $0x4] sm:$0xf]
    %v28 = vld [vmem:[%s1 + $0x8] sm:$0xf]
    %v29 = vld [vmem:[%s1 + $0xc] sm:$0xf]
    %v30 = vld [vmem:[%s1 + $0x10] sm:$0xf]
    %v31 = vld [vmem:[%s1 + $0x14] sm:$0xf]
    %v32 = vld [vmem:[%s1 + $0x18] sm:$0xf]
    %v33 = vld [vmem:[%s1 + $0x1c] sm:$0xf]
    %v34 = vld [vmem:[%s1 + $0x20] sm:$0xf]
    %v35 = vld [vmem:[%s1 + $0x24] sm:$0xf]
    %v36 = vld [vmem:[%s1 + $0x28] sm:$0xf]
    %v37 = vld [vmem:[%s1 + $0x2c] sm:$0xf]
    %v38 = vld [vmem:[%s1 + $0x30] sm:$0xf]
    %v39 = vld [vmem:[%s1 + $0x34] sm:$0xf]
    %v40 = vld [vmem:[%s1 + $0x38] sm:$0xf]
    %v41 = vld [vmem:[%s1 + $0x3c] sm:$0xf]
    %v42 = vld [vmem:[%s1 + $0x40] sm:$0xf]
    %v43 = vld [vmem:[%s1 + $0x44] sm:$0xf]
    %v44 = vld [vmem:[%s1 + $0x48] sm:$0xf]
    %v45 = vld [vmem:[%s1 + $0x4c] sm:$0xf]
    %v46 = vld [vmem:[%s1 + $0x50] sm:$0xf]
    %v47 = vld [vmem:[%s1 + $0x54] sm:$0xf]
    %v48 = vld [vmem:[%s1 + $0x58] sm:$0xf]
    %v49 = vld [vmem:[%s1 + $0x5c] sm:$0xf]
    %v50 = vld [vmem:[%s1 + $0x60] sm:$0xf]
    %v51 = vld [vmem:[%s1 + $0x64] sm:$0xf]
    %v52 = vld [vmem:[%s1 + $0x68] sm:$0xf]
    %v53 = vld [vmem:[%s1 + $0x6c] sm:$0xf]
    %v54 = vld [vmem:[%s1 + $0x70] sm:$0xf]
    %v55 = vld [vmem:[%s1 + $0x74] sm:$0xf]
    %v56 = vld [vmem:[%s1 + $0x78] sm:$0xf]
    %v57 = vld [vmem:[%s1 + $0x7c] sm:$0xf]
    %v58 = vld [vmem:[%s1 + $0x80] sm:$0xf]
    %v59 = vld [vmem:[%s1 + $0x84] sm:$0xf]
    %v60 = vld [vmem:[%s1 + $0x88] sm:$0xf]
    %v61 = vld [vmem:[%s1 + $0x8c] sm:$0xf]
    %v62 = vld [vmem:[%s1 + $0x90] sm:$0xf]
    %v63 = vld [vmem:[%s1 + $0x94] sm:$0xf]
    %v64 = vld [vmem:[%s1 + $0x98] sm:$0xf]
    %v65 = vld [vmem:[%s1 + $0x9c] sm:$0xf]
    %v66 = vld [vmem:[%s1 + $0xa0] sm:$0xf]
    %v67 = vld [vmem:[%s1 + $0xa4] sm:$0xf]
    %v68 = vld [vmem:[%s1 + $0xa8] sm:$0xf]
    %v69 = vld [vmem:[%s1 + $0xac] sm:$0xf]
    %v70 = vld [vmem:[%s1 + $0xb0] sm:$0xf]
    %v71 = vld [vmem:[%s1 + $0xb4] sm:$0xf]
    %v72 = vld [vmem:[%s1 + $0xb8] sm:$0xf]
    %v73 = vld [vmem:[%s1 + $0xbc] sm:$0xf]
    %v74 = vld [vmem:[%s1 + $0xc0] sm:$0xf]
    %v75 = vld [vmem:[%s1 + $0xc4] sm:$0xf]
    %v76 = vld [vmem:[%s1 + $0xc8] sm:$0xf]
    %v77 = vld [vmem:[%s1 + $0xcc] sm:$0xf]
    %v78 = vld [vmem:[%s1 + $0xd0] sm:$0xf]
    %v79 = vld [vmem:[%s1 + $0xd4] sm:$0xf]
    %v80 = vld [vmem:[%s1 + $0xd8] sm:$0xf]
    %v81 = vld [vmem:[%s1 + $0xdc] sm:$0xf]
    %v82 = vld [vmem:[%s1 + $0xe0] sm:$0xf]
    %v83 = vld [vmem:[%s1 + $0xe4] sm:$0xf]
    %v84 = vld [vmem:[%s1 + $0xe8] sm:$0xf]
    %v85 = vld [vmem:[%s1 + $0xec] sm:$0xf]
    %v86 = vld [vmem:[%s1 + $0xf0] sm:$0xf]
    %v87 = vld [vmem:[%s1 + $0xf4] sm:$0xf]
    %v88 = vld [vmem:[%s1 + $0xf8] sm:$0xf]
    %v89 = vld [vmem:[%s1 + $0xfc] sm:$0xf]
    %v90 = vld [vmem:[%s1 + $0x100] sm:$0xf]
    %v91 = vld [vmem:[%s1 + $0x104] sm:$0xf]
    %v92 = vld [vmem:[%s1 + $0x108] sm:$0xf]
    %v93 = vld [vmem:[%s1 + $0x10c] sm:$0xf]
    %v94 = vld [vmem:[%s1 + $0x110] sm:$0xf]
    %v95 = vld [vmem:[%s1 + $0x114] sm:$0xf]
    %v96 = vld [vmem:[%s1 + $0x118] sm:$0xf]
    %v97 = vld [vmem:[%s1 + $0x11c] sm:$0xf]
    %v98 = vld [vmem:[%s1 + $0x120] sm:$0xf]
    %v99 = vld [vmem:[%s1 + $0x124] sm:$0xf]
    %v100 = vld [vmem:[%s1 + $0x128] sm:$0xf]
    %v101 = vld [vmem:[%s1 + $0x12c] sm:$0xf]
    %v102 = vld [vmem:[%s1 + $0x130] sm:$0xf]
    %v103 = vld [vmem:[%s1 + $0x134] sm:$0xf]
    %v104 = vld [vmem:[%s1 + $0x138] sm:$0xf]
    %v105 = vld [vmem:[%s1 + $0x13c] sm:$0xf]
    %v106 = vld [vmem:[%s1 + $0x140] sm:$0xf]
    %v107 = vld [vmem:[%s1 + $0x144] sm:$0xf]
    %v108 = vld [vmem:[%s1 + $0x148] sm:$0xf]
    %v109 = vld [vmem:[%s1 + $0x14c] sm:$0xf]
    %v110 = vld [vmem:[%s1 + $0x150] sm:$0xf]
    %v111 = vld [vmem:[%s1 + $0x154] sm:$0xf]
    %v112 = vld [vmem:[%s1 + $0x158] sm:$0xf]
    %v113 = vld [vmem:[%s1 + $0x15c] sm:$0xf]
    %v114 = vld [vmem:[%s1 + $0x160] sm:$0xf]
    %v115 = vld [vmem:[%s1 + $0x164] sm:$0xf]
    %v116 = vld [vmem:[%s1 + $0x168] sm:$0xf]
    %v117 = vld [vmem:[%s1 + $0x16c] sm:$0xf]
    %v118 = vld [vmem:[%s1 + $0x170] sm:$0xf]
    %v119 = vld [vmem:[%s1 + $0x174] sm:$0xf]
    %v120 = vld [vmem:[%s1 + $0x178] sm:$0xf]
    %v121 = vld [vmem:[%s1 + $0x17c] sm:$0xf]
    %v122 = vld [vmem:[%s1 + $0x180] sm:$0xf]
    %v123 = vld [vmem:[%s1 + $0x184] sm:$0xf]
    %v124 = vld [vmem:[%s1 + $0x188] sm:$0xf]
    %v125 = vld [vmem:[%s1 + $0x18c] sm:$0xf]
    %v126 = vld [vmem:[%s1 + $0x190] sm:$0xf]
    %v127 = vld [vmem:[%s1 + $0x194] sm:$0xf]
    %v128 = vld [vmem:[%s1 + $0x198] sm:$0xf]
    %v129 = vld [vmem:[%s1 + $0x19c] sm:$0xf]
    %v130 = vld [vmem:[%s1 + $0x1a0] sm:$0xf]
    %v131 = vld [vmem:[%s1 + $0x1a4] sm:$0xf]
    %v132 = vld [vmem:[%s1 + $0x1a8] sm:$0xf]
    %v133 = vld [vmem:[%s1 + $0x1ac] sm:$0xf]
    %v134 = vld [vmem:[%s1 + $0x1b0] sm:$0xf]
    %v135 = vld [vmem:[%s1 + $0x1b4] sm:$0xf]
    %v136 = vld [vmem:[%s1 + $0x1b8] sm:$0xf]
    %v137 = vld [vmem:[%s1 + $0x1bc] sm:$0xf]
    %v138 = vld [vmem:[%s1 + $0x1c0] sm:$0xf]
    %v139 = vld [vmem:[%s1 + $0x1c4] sm:$0xf]
    %v140 = vld [vmem:[%s1 + $0x1c8] sm:$0xf]
    %v141 = vld [vmem:[%s1 + $0x1cc] sm:$0xf]
    %v142 = vld [vmem:[%s1 + $0x1d0] sm:$0xf]
    %v143 = vld [vmem:[%s1 + $0x1d4] sm:$0xf]
    %v144 = vld [vmem:[%s1 + $0x1d8] sm:$0xf]
    %v145 = vld [vmem:[%s1 + $0x1dc] sm:$0xf]
    %v146 = vld [vmem:[%s1 + $0x1e0] sm:$0xf]
    %v147 = vld [vmem:[%s1 + $0x1e4] sm:$0xf]
    %v148 = vld [vmem:[%s1 + $0x1e8] sm:$0xf]
    %v149 = vld [vmem:[%s1 + $0x1ec] sm:$0xf]
    %v150 = vld [vmem:[%s1 + $0x1f0] sm:$0xf]
    %v151 = vld [vmem:[%s1 + $0x1f4] sm:$0xf]
    %v152 = vld [vmem:[%s1 + $0x1f8] sm:$0xf]
    %v153 = vld [vmem:[%s1 + $0x1fc] sm:$0xf]
    %v154 = vld [vmem:[%s1 + $0x200] sm:$0xf]
    %v155 = vld [vmem:[%s1 + $0x204] sm:$0xf]
    %v156 = vld [vmem:[%s1 + $0x208] sm:$0xf]
    %v157 = vld [vmem:[%s1 + $0x20c] sm:$0xf]
    %v158 = vld [vmem:[%s1 + $0x210] sm:$0xf]
    %v159 = vld [vmem:[%s1 + $0x214] sm:$0xf]
    %v160 = vld [vmem:[%s1 + $0x218] sm:$0xf]
    %v161 = vld [vmem:[%s1 + $0x21c] sm:$0xf]
    %v162 = vld [vmem:[%s1 + $0x220] sm:$0xf]
    %v163 = vld [vmem:[%s1 + $0x224] sm:$0xf]
    %v164 = vld [vmem:[%s1 + $0x228] sm:$0xf]
    %v165 = vld [vmem:[%s1 + $0x22c] sm:$0xf]
    %v166 = vld [vmem:[%s1 + $0x230] sm:$0xf]
    %v167 = vld [vmem:[%s1 + $0x234] sm:$0xf]
    %v168 = vld [vmem:[%s1 + $0x238] sm:$0xf]
    %v169 = vld [vmem:[%s1 + $0x23c] sm:$0xf]
    %v170 = vld [vmem:[%s1 + $0x240] sm:$0xf]
    %v171 = vld [vmem:[%s1 + $0x244] sm:$0xf]
    %v172 = vld [vmem:[%s1 + $0x248] sm:$0xf]
    %v173 = vld [vmem:[%s1 + $0x24c] sm:$0xf]
    %v174 = vld [vmem:[%s1 + $0x250] sm:$0xf]
    %v175 = vld [vmem:[%s1 + $0x254] sm:$0xf]
    %v176 = vld [vmem:[%s1 + $0x258] sm:$0xf]
    %v177 = vld [vmem:[%s1 + $0x25c] sm:$0xf]
    %v178 = vld [vmem:[%s1 + $0x260] sm:$0xf]
    %v179 = vld [vmem:[%s1 + $0x264] sm:$0xf]
    %v180 = vld [vmem:[%s1 + $0x268] sm:$0xf]
    %v181 = vld [vmem:[%s1 + $0x26c] sm:$0xf]
    %v182 = vld [vmem:[%s1 + $0x270] sm:$0xf]
    %v183 = vld [vmem:[%s1 + $0x274] sm:$0xf]
    %v184 = vld [vmem:[%s1 + $0x278] sm:$0xf]
    %v185 = vld [vmem:[%s1 + $0x27c] sm:$0xf]
    %v186 = vld [vmem:[%s1 + $0x280] sm:$0xf]
    %v187 = vld [vmem:[%s1 + $0x284] sm:$0xf]
    %v188 = vld [vmem:[%s1 + $0x288] sm:$0xf]
    %v189 = vld [vmem:[%s1 + $0x28c] sm:$0xf]
    %v190 = vld [vmem:[%s1 + $0x290] sm:$0xf]
    %v191 = vld [vmem:[%s1 + $0x294] sm:$0xf]
    %v192 = vld [vmem:[%s1 + $0x298] sm:$0xf]
    %v193 = vld [vmem:[%s1 + $0x29c] sm:$0xf]
    %v194 = vld [vmem:[%s1 + $0x2a0] sm:$0xf]
    %v195 = vld [vmem:[%s1 + $0x2a4] sm:$0xf]
    %v196 = vld [vmem:[%s1 + $0x2a8] sm:$0xf]
    %v197 = vld [vmem:[%s1 + $0x2ac] sm:$0xf]
    %v198 = vld [vmem:[%s1 + $0x2b0] sm:$0xf]
    %v199 = vld [vmem:[%s1 + $0x2b4] sm:$0xf]
    %v200 = vld [vmem:[%s1 + $0x2b8] sm:$0xf]
    %v201 = vld [vmem:[%s1 + $0x2bc] sm:$0xf]
    %v202 = vld [vmem:[%s1 + $0x2c0] sm:$0xf]
    %v203 = vld [vmem:[%s1 + $0x2c4] sm:$0xf]
    %v204 = vld [vmem:[%s1 + $0x2c8] sm:$0xf]
    %v205 = vld [vmem:[%s1 + $0x2cc] sm:$0xf]
    %v206 = vld [vmem:[%s1 + $0x2d0] sm:$0xf]
    %v207 = vld [vmem:[%s1 + $0x2d4] sm:$0xf]
    %v208 = vld [vmem:[%s1 + $0x2d8] sm:$0xf]
    %v209 = vld [vmem:[%s1 + $0x2dc] sm:$0xf]
    %v210 = vld [vmem:[%s1 + $0x2e0] sm:$0xf]
    %v211 = vld [vmem:[%s1 + $0x2e4] sm:$0xf]
    %v212 = vld [vmem:[%s1 + $0x2e8] sm:$0xf]
    %v213 = vld [vmem:[%s1 + $0x2ec] sm:$0xf]
    %v214 = vld [vmem:[%s1 + $0x2f0] sm:$0xf]
    %v215 = vld [vmem:[%s1 + $0x2f4] sm:$0xf]
    %v216 = vld [vmem:[%s1 + $0x2f8] sm:$0xf]
    %v217 = vld [vmem:[%s1 + $0x2fc] sm:$0xf]
    %v218 = vld [vmem:[%s1 + $0x300] sm:$0xf]
    %v219 = vld [vmem:[%s1 + $0x304] sm:$0xf]
    %v220 = vld [vmem:[%s1 + $0x308] sm:$0xf]
    %v221 = vld [vmem:[%s1 + $0x30c] sm:$0xf]
    %v222 = vld [vmem:[%s1 + $0x310] sm:$0xf]
    %v223 = vld [vmem:[%s1 + $0x314] sm:$0xf]
    %v224 = vld [vmem:[%s1 + $0x318] sm:$0xf]
    %v225 = vld [vmem:[%s1 + $0x31c] sm:$0xf]
    %v226 = vld [vmem:[%s1 + $0x320] sm:$0xf]
    %v227 = vld [vmem:[%s1 + $0x324] sm:$0xf]
    %v228 = vld [vmem:[%s1 + $0x328] sm:$0xf]
    %v229 = vld [vmem:[%s1 + $0x32c] sm:$0xf]
    %v230 = vld [vmem:[%s1 + $0x330] sm:$0xf]
    %v231 = vld [vmem:[%s1 + $0x334] sm:$0xf]
    %v232 = vld [vmem:[%s1 + $0x338] sm:$0xf]
    %v233 = vld [vmem:[%s1 + $0x33c] sm:$0xf]
    %v234 = vld [vmem:[%s1 + $0x340] sm:$0xf]
    %v235 = vld [vmem:[%s1 + $0x344] sm:$0xf]
    %v236 = vld [vmem:[%s1 + $0x348] sm:$0xf]
    %v237 = vld [vmem:[%s1 + $0x34c] sm:$0xf]
    %v238 = vld [vmem:[%s1 + $0x350] sm:$0xf]
    %v239 = vld [vmem:[%s1 + $0x354] sm:$0xf]
    %v240 = vld [vmem:[%s1 + $0x358] sm:$0xf]
    %v241 = vld [vmem:[%s1 + $0x35c] sm:$0xf]
    %v242 = vld [vmem:[%s1 + $0x360] sm:$0xf]
    %v243 = vld [vmem:[%s1 + $0x364] sm:$0xf]
    %v244 = vld [vmem:[%s1 + $0x368] sm:$0xf]
    %v245 = vld [vmem:[%s1 + $0x36c] sm:$0xf]
    %v246 = vld [vmem:[%s1 + $0x370] sm:$0xf]
    %v247 = vld [vmem:[%s1 + $0x374] sm:$0xf]
    %v248 = vld [vmem:[%s1 + $0x378] sm:$0xf]
    %v249 = vld [vmem:[%s1 + $0x37c] sm:$0xf]
    %v250 = vld [vmem:[%s2] sm:$0x1]
    %v252 = vlaneseq
    %v253 = vshrl.u32 %v252, 7
    %v254 = vsub.s32 0, %v253
    %v255 = vrot.slane %v250, %v254
    %v261 = vcombine.high %v22, %v22
    %v263 = vunpack.c.l.s4 1983009808
    %v264 = vunpack.c.0.s8 %v263
    %v265 = vlaneseq
    %v266 = vshrl.u32 %v265, 7
    %v267 = vsub.s32 %v264, %v266
    %v268 = vrot.slane %v22, %v267
    %v270 = vunpack.c.l.s4 1983009808
    %v271 = vunpack.c.0.s8 %v270
    %v272 = vlaneseq
    %v273 = vshrl.u32 %v272, 7
    %v274 = vsub.s32 %v271, %v273
    %v275 = vrot.slane %v261, %v274
    %v276 = vcombine.high %v268, %v268
    %v277 = vcombine.high %v275, %v275
    %v278 = vcombine.high %v23, %v23
    %v280 = vunpack.c.l.s4 1983009808
    %v281 = vunpack.c.0.s8 %v280
    %v282 = vlaneseq
    %v283 = vshrl.u32 %v282, 7
    %v284 = vsub.s32 %v281, %v283
    %v285 = vrot.slane %v23, %v284
    %v287 = vunpack.c.l.s4 1983009808
    %v288 = vunpack.c.0.s8 %v287
    %v289 = vlaneseq
    %v290 = vshrl.u32 %v289, 7
    %v291 = vsub.s32 %v288, %v290
    %v292 = vrot.slane %v278, %v291
    %v293 = vcombine.high %v285, %v285
    %v294 = vcombine.high %v292, %v292
    %v295 = vcombine.high %v24, %v24
    %v297 = vunpack.c.l.s4 1983009808
    %v298 = vunpack.c.0.s8 %v297
    %v299 = vlaneseq
    %v300 = vshrl.u32 %v299, 7
    %v301 = vsub.s32 %v298, %v300
    %v302 = vrot.slane %v24, %v301
    %v304 = vunpack.c.l.s4 1983009808
    %v305 = vunpack.c.0.s8 %v304
    %v306 = vlaneseq
    %v307 = vshrl.u32 %v306, 7
    %v308 = vsub.s32 %v305, %v307
    %v309 = vrot.slane %v295, %v308
    %v310 = vcombine.high %v302, %v302
    %v311 = vcombine.high %v309, %v309
    %v313 = vunpack.c.l.s4 1983009808
    %v314 = vunpack.c.0.s8 %v313
    %v315 = vlaneseq
    %v316 = vshrl.u32 %v315, 7
    %v317 = vsub.s32 %v314, %v316
    %v318 = vrot.slane %v25, %v317
    %v319 = vcombine.high %v318, %v318
    %v558 = vunpack.c.l.b16 %v26
    %v559 = vunpack.c.l.b16 %v27
    %v560 = vunpack.c.l.b16 %v28
    %v561 = vunpack.c.l.b16 %v29
    %v562 = vunpack.c.l.b16 %v30
    %v563 = vunpack.c.l.b16 %v31
    %v564 = vunpack.c.l.b16 %v32
    %v565 = vunpack.c.l.b16 %v33
    %v566 = vunpack.c.l.b16 %v34
    %v567 = vunpack.c.l.b16 %v35
    %v568 = vunpack.c.l.b16 %v36
    %v569 = vunpack.c.l.b16 %v37
    %v570 = vunpack.c.l.b16 %v38
    %v571 = vunpack.c.l.b16 %v39
    %v572 = vunpack.c.l.b16 %v40
    %v573 = vunpack.c.l.b16 %v41
    %v574 = vunpack.c.l.b16 %v42
    %v575 = vunpack.c.l.b16 %v43
    %v576 = vunpack.c.l.b16 %v44
    %v577 = vunpack.c.l.b16 %v45
    %v578 = vunpack.c.l.b16 %v46
    %v579 = vunpack.c.l.b16 %v47
    %v580 = vunpack.c.l.b16 %v48
    %v581 = vunpack.c.l.b16 %v49
    %v582 = vunpack.c.l.b16 %v50
    %v583 = vunpack.c.l.b16 %v51
    %v584 = vunpack.c.l.b16 %v52
    %v585 = vunpack.c.l.b16 %v53
    %v586 = vunpack.c.l.b16 %v54
    %v587 = vunpack.c.l.b16 %v55
    %v588 = vunpack.c.l.b16 %v56
    %v589 = vunpack.c.l.b16 %v57
    %v590 = vunpack.c.l.b16 %v58
    %v591 = vunpack.c.l.b16 %v59
    %v592 = vunpack.c.l.b16 %v60
    %v593 = vunpack.c.l.b16 %v61
    %v594 = vunpack.c.l.b16 %v62
    %v595 = vunpack.c.l.b16 %v63
    %v596 = vunpack.c.l.b16 %v64
    %v597 = vunpack.c.l.b16 %v65
    %v598 = vunpack.c.l.b16 %v66
    %v599 = vunpack.c.l.b16 %v67
    %v600 = vunpack.c.l.b16 %v68
    %v601 = vunpack.c.l.b16 %v69
    %v602 = vunpack.c.l.b16 %v70
    %v603 = vunpack.c.l.b16 %v71
    %v604 = vunpack.c.l.b16 %v72
    %v605 = vunpack.c.l.b16 %v73
    %v606 = vunpack.c.l.b16 %v74
    %v607 = vunpack.c.l.b16 %v75
    %v608 = vunpack.c.l.b16 %v76
    %v609 = vunpack.c.l.b16 %v77
    %v610 = vunpack.c.l.b16 %v78
    %v611 = vunpack.c.l.b16 %v79
    %v612 = vunpack.c.l.b16 %v80
    %v613 = vunpack.c.l.b16 %v81
    %v614 = vunpack.c.l.b16 %v82
    %v615 = vunpack.c.l.b16 %v83
    %v616 = vunpack.c.l.b16 %v84
    %v617 = vunpack.c.l.b16 %v85
    %v618 = vunpack.c.l.b16 %v86
    %v619 = vunpack.c.l.b16 %v87
    %v620 = vunpack.c.l.b16 %v88
    %v621 = vunpack.c.l.b16 %v89
    %v622 = vunpack.c.l.b16 %v90
    %v623 = vunpack.c.l.b16 %v91
    %v624 = vunpack.c.l.b16 %v92
    %v625 = vunpack.c.l.b16 %v93
    %v626 = vunpack.c.l.b16 %v94
    %v627 = vunpack.c.l.b16 %v95
    %v628 = vunpack.c.l.b16 %v96
    %v629 = vunpack.c.l.b16 %v97
    %v630 = vunpack.c.l.b16 %v98
    %v631 = vunpack.c.l.b16 %v99
    %v632 = vunpack.c.l.b16 %v100
    %v633 = vunpack.c.l.b16 %v101
    %v634 = vunpack.c.l.b16 %v102
    %v635 = vunpack.c.l.b16 %v103
    %v636 = vunpack.c.l.b16 %v104
    %v637 = vunpack.c.l.b16 %v105
    %v638 = vunpack.c.l.b16 %v106
    %v639 = vunpack.c.l.b16 %v107
    %v640 = vunpack.c.l.b16 %v108
    %v641 = vunpack.c.l.b16 %v109
    %v642 = vunpack.c.l.b16 %v110
    %v643 = vunpack.c.l.b16 %v111
    %v644 = vunpack.c.l.b16 %v112
    %v645 = vunpack.c.l.b16 %v113
    %v646 = vunpack.c.l.b16 %v114
    %v647 = vunpack.c.l.b16 %v115
    %v648 = vunpack.c.l.b16 %v116
    %v649 = vunpack.c.l.b16 %v117
    %v650 = vunpack.c.l.b16 %v118
    %v651 = vunpack.c.l.b16 %v119
    %v652 = vunpack.c.l.b16 %v120
    %v653 = vunpack.c.l.b16 %v121
    %v654 = vunpack.c.l.b16 %v122
    %v655 = vunpack.c.l.b16 %v123
    %v656 = vunpack.c.l.b16 %v124
    %v657 = vunpack.c.l.b16 %v125
    %v658 = vunpack.c.l.b16 %v126
    %v659 = vunpack.c.l.b16 %v127
    %v660 = vunpack.c.l.b16 %v128
    %v661 = vunpack.c.l.b16 %v129
    %v662 = vunpack.c.l.b16 %v130
    %v663 = vunpack.c.l.b16 %v131
    %v664 = vunpack.c.l.b16 %v132
    %v665 = vunpack.c.l.b16 %v133
    %v666 = vunpack.c.l.b16 %v134
    %v667 = vunpack.c.l.b16 %v135
    %v668 = vunpack.c.l.b16 %v136
    %v669 = vunpack.c.l.b16 %v137
    %v670 = vunpack.c.l.b16 %v138
    %v671 = vunpack.c.l.b16 %v139
    %v672 = vunpack.c.l.b16 %v140
    %v673 = vunpack.c.l.b16 %v141
    %v674 = vunpack.c.l.b16 %v142
    %v675 = vunpack.c.l.b16 %v143
    %v676 = vunpack.c.l.b16 %v144
    %v677 = vunpack.c.l.b16 %v145
    %v678 = vunpack.c.l.b16 %v146
    %v679 = vunpack.c.l.b16 %v147
    %v680 = vunpack.c.l.b16 %v148
    %v681 = vunpack.c.l.b16 %v149
    %v682 = vunpack.c.l.b16 %v150
    %v683 = vunpack.c.l.b16 %v151
    %v684 = vunpack.c.l.b16 %v152
    %v685 = vunpack.c.l.b16 %v153
    %v686 = vunpack.c.l.b16 %v154
    %v687 = vunpack.c.l.b16 %v155
    %v688 = vunpack.c.l.b16 %v156
    %v689 = vunpack.c.l.b16 %v157
    %v690 = vunpack.c.l.b16 %v158
    %v691 = vunpack.c.l.b16 %v159
    %v692 = vunpack.c.l.b16 %v160
    %v693 = vunpack.c.l.b16 %v161
    %v694 = vunpack.c.l.b16 %v162
    %v695 = vunpack.c.l.b16 %v163
    %v696 = vunpack.c.l.b16 %v164
    %v697 = vunpack.c.l.b16 %v165
    %v698 = vunpack.c.l.b16 %v166
    %v699 = vunpack.c.l.b16 %v167
    %v700 = vunpack.c.l.b16 %v168
    %v701 = vunpack.c.l.b16 %v169
    %v702 = vunpack.c.l.b16 %v170
    %v703 = vunpack.c.l.b16 %v171
    %v704 = vunpack.c.l.b16 %v172
    %v705 = vunpack.c.l.b16 %v173
    %v706 = vunpack.c.l.b16 %v174
    %v707 = vunpack.c.l.b16 %v175
    %v708 = vunpack.c.l.b16 %v176
    %v709 = vunpack.c.l.b16 %v177
    %v710 = vunpack.c.l.b16 %v178
    %v711 = vunpack.c.l.b16 %v179
    %v712 = vunpack.c.l.b16 %v180
    %v713 = vunpack.c.l.b16 %v181
    %v714 = vunpack.c.l.b16 %v182
    %v715 = vunpack.c.l.b16 %v183
    %v716 = vunpack.c.l.b16 %v184
    %v717 = vunpack.c.l.b16 %v185
    %v718 = vunpack.c.l.b16 %v186
    %v719 = vunpack.c.l.b16 %v187
    %v720 = vunpack.c.l.b16 %v188
    %v721 = vunpack.c.l.b16 %v189
    %v722 = vunpack.c.l.b16 %v190
    %v723 = vunpack.c.l.b16 %v191
    %v724 = vunpack.c.l.b16 %v192
    %v725 = vunpack.c.l.b16 %v193
    %v726 = vunpack.c.l.b16 %v194
    %v727 = vunpack.c.l.b16 %v195
    %v728 = vunpack.c.l.b16 %v196
    %v729 = vunpack.c.l.b16 %v197
    %v730 = vunpack.c.l.b16 %v198
    %v731 = vunpack.c.l.b16 %v199
    %v732 = vunpack.c.l.b16 %v200
    %v733 = vunpack.c.l.b16 %v201
    %v734 = vunpack.c.l.b16 %v202
    %v735 = vunpack.c.l.b16 %v203
    %v736 = vunpack.c.l.b16 %v204
    %v737 = vunpack.c.l.b16 %v205
    %v738 = vunpack.c.l.b16 %v206
    %v739 = vunpack.c.l.b16 %v207
    %v740 = vunpack.c.l.b16 %v208
    %v741 = vunpack.c.l.b16 %v209
    %v742 = vunpack.c.l.b16 %v210
    %v743 = vunpack.c.l.b16 %v211
    %v744 = vunpack.c.l.b16 %v212
    %v745 = vunpack.c.l.b16 %v213
    %v746 = vunpack.c.l.b16 %v214
    %v747 = vunpack.c.l.b16 %v215
    %v748 = vunpack.c.l.b16 %v216
    %v749 = vunpack.c.l.b16 %v217
    %v750 = vunpack.c.l.b16 %v218
    %v751 = vunpack.c.l.b16 %v219
    %v752 = vunpack.c.l.b16 %v220
    %v753 = vunpack.c.l.b16 %v221
    %v754 = vunpack.c.l.b16 %v222
    %v755 = vunpack.c.l.b16 %v223
    %v756 = vunpack.c.l.b16 %v224
    %v757 = vunpack.c.l.b16 %v225
    %v758 = vunpack.c.l.b16 %v226
    %v759 = vunpack.c.l.b16 %v227
    %v760 = vunpack.c.l.b16 %v228
    %v761 = vunpack.c.l.b16 %v229
    %v762 = vunpack.c.l.b16 %v230
    %v763 = vunpack.c.l.b16 %v231
    %v764 = vunpack.c.l.b16 %v232
    %v765 = vunpack.c.l.b16 %v233
    %v766 = vunpack.c.l.b16 %v234
    %v767 = vunpack.c.l.b16 %v235
    %v768 = vunpack.c.l.b16 %v236
    %v769 = vunpack.c.l.b16 %v237
    %v770 = vunpack.c.l.b16 %v238
    %v771 = vunpack.c.l.b16 %v239
    %v772 = vunpack.c.l.b16 %v240
    %v773 = vunpack.c.l.b16 %v241
    %v774 = vunpack.c.l.b16 %v242
    %v775 = vunpack.c.l.b16 %v243
    %v776 = vunpack.c.l.b16 %v244
    %v777 = vunpack.c.l.b16 %v245
    %v778 = vunpack.c.l.b16 %v246
    %v779 = vunpack.c.l.b16 %v247
    %v780 = vunpack.c.l.b16 %v248
    %v781 = vunpack.c.l.b16 %v249
    %v782 = vpack.c.b16 %v559, %v558
    %v783 = vpack.c.b16 %v561, %v560
    %v784 = vpack.c.b16 %v563, %v562
    %v785 = vpack.c.b16 %v565, %v564
    %v786 = vpack.c.b16 %v567, %v566
    %v787 = vpack.c.b16 %v569, %v568
    %v788 = vpack.c.b16 %v571, %v570
    %v789 = vpack.c.b16 %v573, %v572
    %v790 = vpack.c.b16 %v575, %v574
    %v791 = vpack.c.b16 %v577, %v576
    %v792 = vpack.c.b16 %v579, %v578
    %v793 = vpack.c.b16 %v581, %v580
    %v794 = vpack.c.b16 %v583, %v582
    %v795 = vpack.c.b16 %v585, %v584
    %v796 = vpack.c.b16 %v587, %v586
    %v797 = vpack.c.b16 %v589, %v588
    %v798 = vpack.c.b16 %v591, %v590
    %v799 = vpack.c.b16 %v593, %v592
    %v800 = vpack.c.b16 %v595, %v594
    %v801 = vpack.c.b16 %v597, %v596
    %v802 = vpack.c.b16 %v599, %v598
    %v803 = vpack.c.b16 %v601, %v600
    %v804 = vpack.c.b16 %v603, %v602
    %v805 = vpack.c.b16 %v605, %v604
    %v806 = vpack.c.b16 %v607, %v606
    %v807 = vpack.c.b16 %v609, %v608
    %v808 = vpack.c.b16 %v611, %v610
    %v809 = vpack.c.b16 %v613, %v612
    %v810 = vpack.c.b16 %v615, %v614
    %v811 = vpack.c.b16 %v617, %v616
    %v812 = vpack.c.b16 %v619, %v618
    %v813 = vpack.c.b16 %v621, %v620
    %v814 = vpack.c.b16 %v623, %v622
    %v815 = vpack.c.b16 %v625, %v624
    %v816 = vpack.c.b16 %v627, %v626
    %v817 = vpack.c.b16 %v629, %v628
    %v818 = vpack.c.b16 %v631, %v630
    %v819 = vpack.c.b16 %v633, %v632
    %v820 = vpack.c.b16 %v635, %v634
    %v821 = vpack.c.b16 %v637, %v636
    %v822 = vpack.c.b16 %v639, %v638
    %v823 = vpack.c.b16 %v641, %v640
    %v824 = vpack.c.b16 %v643, %v642
    %v825 = vpack.c.b16 %v645, %v644
    %v826 = vpack.c.b16 %v647, %v646
    %v827 = vpack.c.b16 %v649, %v648
    %v828 = vpack.c.b16 %v651, %v650
    %v829 = vpack.c.b16 %v653, %v652
    %v830 = vpack.c.b16 %v655, %v654
    %v831 = vpack.c.b16 %v657, %v656
    %v832 = vpack.c.b16 %v659, %v658
    %v833 = vpack.c.b16 %v661, %v660
    %v834 = vpack.c.b16 %v663, %v662
    %v835 = vpack.c.b16 %v665, %v664
    %v836 = vpack.c.b16 %v667, %v666
    %v837 = vpack.c.b16 %v669, %v668
    %v838 = vpack.c.b16 %v671, %v670
    %v839 = vpack.c.b16 %v673, %v672
    %v840 = vpack.c.b16 %v675, %v674
    %v841 = vpack.c.b16 %v677, %v676
    %v842 = vpack.c.b16 %v679, %v678
    %v843 = vpack.c.b16 %v681, %v680
    %v844 = vpack.c.b16 %v683, %v682
    %v845 = vpack.c.b16 %v685, %v684
    %v846 = vpack.c.b16 %v687, %v686
    %v847 = vpack.c.b16 %v689, %v688
    %v848 = vpack.c.b16 %v691, %v690
    %v849 = vpack.c.b16 %v693, %v692
    %v850 = vpack.c.b16 %v695, %v694
    %v851 = vpack.c.b16 %v697, %v696
    %v852 = vpack.c.b16 %v699, %v698
    %v853 = vpack.c.b16 %v701, %v700
    %v854 = vpack.c.b16 %v703, %v702
    %v855 = vpack.c.b16 %v705, %v704
    %v856 = vpack.c.b16 %v707, %v706
    %v857 = vpack.c.b16 %v709, %v708
    %v858 = vpack.c.b16 %v711, %v710
    %v859 = vpack.c.b16 %v713, %v712
    %v860 = vpack.c.b16 %v715, %v714
    %v861 = vpack.c.b16 %v717, %v716
    %v862 = vpack.c.b16 %v719, %v718
    %v863 = vpack.c.b16 %v721, %v720
    %v864 = vpack.c.b16 %v723, %v722
    %v865 = vpack.c.b16 %v725, %v724
    %v866 = vpack.c.b16 %v727, %v726
    %v867 = vpack.c.b16 %v729, %v728
    %v868 = vpack.c.b16 %v731, %v730
    %v869 = vpack.c.b16 %v733, %v732
    %v870 = vpack.c.b16 %v735, %v734
    %v871 = vpack.c.b16 %v737, %v736
    %v872 = vpack.c.b16 %v739, %v738
    %v873 = vpack.c.b16 %v741, %v740
    %v874 = vpack.c.b16 %v743, %v742
    %v875 = vpack.c.b16 %v745, %v744
    %v876 = vpack.c.b16 %v747, %v746
    %v877 = vpack.c.b16 %v749, %v748
    %v878 = vpack.c.b16 %v751, %v750
    %v879 = vpack.c.b16 %v753, %v752
    %v880 = vpack.c.b16 %v755, %v754
    %v881 = vpack.c.b16 %v757, %v756
    %v882 = vpack.c.b16 %v759, %v758
    %v883 = vpack.c.b16 %v761, %v760
    %v884 = vpack.c.b16 %v763, %v762
    %v885 = vpack.c.b16 %v765, %v764
    %v886 = vpack.c.b16 %v767, %v766
    %v887 = vpack.c.b16 %v769, %v768
    %v888 = vpack.c.b16 %v771, %v770
    %v889 = vpack.c.b16 %v773, %v772
    %v890 = vpack.c.b16 %v775, %v774
    %v891 = vpack.c.b16 %v777, %v776
    %v892 = vpack.c.b16 %v779, %v778
    %v893 = vpack.c.b16 %v781, %v780
    %1006 = vmatprep.subr.bf16.mxu0 0
    %1007 = vmatpush1.bf16.msra.mxu0 %v782
    %1008 = vmatprep.subr.bf16.mxu0 0
    %1009 = vmatpush1.bf16.msra.mxu0 %v783
    %1010 = vmatprep.subr.bf16.mxu0 0
    %1011 = vmatpush1.bf16.msra.mxu0 %v784
    %1012 = vmatprep.subr.bf16.mxu0 0
    %1013 = vmatpush1.bf16.msra.mxu0 %v785
    %1014 = vmatprep.subr.bf16.mxu0 0
    %1015 = vmatpush1.bf16.msra.mxu0 %v786
    %1016 = vmatprep.subr.bf16.mxu0 0
    %1017 = vmatpush1.bf16.msra.mxu0 %v787
    %1018 = vmatprep.subr.bf16.mxu0 0
    %1019 = vmatpush1.bf16.msra.mxu0 %v788
    %1020 = vmatprep.subr.bf16.mxu0 0
    %1021 = vmatpush1.bf16.msra.mxu0 %v789
    %1022 = vmatprep.subr.bf16.mxu0 0
    %1023 = vmatpush1.bf16.msra.mxu0 %v790
    %1024 = vmatprep.subr.bf16.mxu0 0
    %1025 = vmatpush1.bf16.msra.mxu0 %v791
    %1026 = vmatprep.subr.bf16.mxu0 0
    %1027 = vmatpush1.bf16.msra.mxu0 %v792
    %1028 = vmatprep.subr.bf16.mxu0 0
    %1029 = vmatpush1.bf16.msra.mxu0 %v793
    %1030 = vmatprep.subr.bf16.mxu0 0
    %1031 = vmatpush1.bf16.msra.mxu0 %v794
    %1032 = vmatprep.subr.bf16.mxu0 0
    %1033 = vmatpush1.bf16.msra.mxu0 %v795
    %1034 = vmatprep.subr.bf16.mxu0 0
    %1035 = vmatpush1.bf16.msra.mxu0 %v796
    %1036 = vmatprep.subr.bf16.mxu0 0
    %1037 = vmatpush1.bf16.msra.mxu0 %v797
    %1038 = vmatprep.mubr.bf16.mxu0 %v276
    %1039 = vmatmul.mubr.bf16.gmra.mrb[0].mxu0 %v268
    %v1040 = vpop.f32.mrb[0].mxu0
    %v1041 = vadd.f32 %v255, %v1040
    %v1042 = vpop.f32.mrb[0].mxu0
    %v1043 = vpop.f32.mrb[0].mxu0
    %v1044 = vpop.f32.mrb[0].mxu0
    %1045 = vdwg.mxu0
    %1046 = vmatprep.subr.bf16.mxu0 0
    %1047 = vmatpush1.bf16.msra.mxu0 %v798
    %1048 = vmatprep.subr.bf16.mxu0 0
    %1049 = vmatpush1.bf16.msra.mxu0 %v799
    %1050 = vmatprep.subr.bf16.mxu0 0
    %1051 = vmatpush1.bf16.msra.mxu0 %v800
    %1052 = vmatprep.subr.bf16.mxu0 0
    %1053 = vmatpush1.bf16.msra.mxu0 %v801
    %1054 = vmatprep.subr.bf16.mxu0 0
    %1055 = vmatpush1.bf16.msra.mxu0 %v802
    %1056 = vmatprep.subr.bf16.mxu0 0
    %1057 = vmatpush1.bf16.msra.mxu0 %v803
    %1058 = vmatprep.subr.bf16.mxu0 0
    %1059 = vmatpush1.bf16.msra.mxu0 %v804
    %1060 = vmatprep.subr.bf16.mxu0 0
    %1061 = vmatpush1.bf16.msra.mxu0 %v805
    %1062 = vmatprep.subr.bf16.mxu0 0
    %1063 = vmatpush1.bf16.msra.mxu0 %v806
    %1064 = vmatprep.subr.bf16.mxu0 0
    %1065 = vmatpush1.bf16.msra.mxu0 %v807
    %1066 = vmatprep.subr.bf16.mxu0 0
    %1067 = vmatpush1.bf16.msra.mxu0 %v808
    %1068 = vmatprep.subr.bf16.mxu0 0
    %1069 = vmatpush1.bf16.msra.mxu0 %v809
    %1070 = vmatprep.subr.bf16.mxu0 0
    %1071 = vmatpush1.bf16.msra.mxu0 %v810
    %1072 = vmatprep.subr.bf16.mxu0 0
    %1073 = vmatpush1.bf16.msra.mxu0 %v811
    %1074 = vmatprep.subr.bf16.mxu0 0
    %1075 = vmatpush1.bf16.msra.mxu0 %v812
    %1076 = vmatprep.subr.bf16.mxu0 0
    %1077 = vmatpush1.bf16.msra.mxu0 %v813
    %1078 = vmatprep.mubr.bf16.mxu0 %v277
    %1079 = vmatmul.mubr.bf16.gmra.mrb[0].mxu0 %v275
    %v1080 = vpop.f32.mrb[0].mxu0
    %v1081 = vadd.f32 %v1041, %v1080
    %v1082 = vpop.f32.mrb[0].mxu0
    %v1083 = vpop.f32.mrb[0].mxu0
    %v1084 = vpop.f32.mrb[0].mxu0
    %1085 = vdwg.mxu0
    %1086 = vmatprep.subr.bf16.mxu0 0
    %1087 = vmatpush1.bf16.msra.mxu0 %v814
    %1088 = vmatprep.subr.bf16.mxu0 0
    %1089 = vmatpush1.bf16.msra.mxu0 %v815
    %1090 = vmatprep.subr.bf16.mxu0 0
    %1091 = vmatpush1.bf16.msra.mxu0 %v816
    %1092 = vmatprep.subr.bf16.mxu0 0
    %1093 = vmatpush1.bf16.msra.mxu0 %v817
    %1094 = vmatprep.subr.bf16.mxu0 0
    %1095 = vmatpush1.bf16.msra.mxu0 %v818
    %1096 = vmatprep.subr.bf16.mxu0 0
    %1097 = vmatpush1.bf16.msra.mxu0 %v819
    %1098 = vmatprep.subr.bf16.mxu0 0
    %1099 = vmatpush1.bf16.msra.mxu0 %v820
    %1100 = vmatprep.subr.bf16.mxu0 0
    %1101 = vmatpush1.bf16.msra.mxu0 %v821
    %1102 = vmatprep.subr.bf16.mxu0 0
    %1103 = vmatpush1.bf16.msra.mxu0 %v822
    %1104 = vmatprep.subr.bf16.mxu0 0
    %1105 = vmatpush1.bf16.msra.mxu0 %v823
    %1106 = vmatprep.subr.bf16.mxu0 0
    %1107 = vmatpush1.bf16.msra.mxu0 %v824
    %1108 = vmatprep.subr.bf16.mxu0 0
    %1109 = vmatpush1.bf16.msra.mxu0 %v825
    %1110 = vmatprep.subr.bf16.mxu0 0
    %1111 = vmatpush1.bf16.msra.mxu0 %v826
    %1112 = vmatprep.subr.bf16.mxu0 0
    %1113 = vmatpush1.bf16.msra.mxu0 %v827
    %1114 = vmatprep.subr.bf16.mxu0 0
    %1115 = vmatpush1.bf16.msra.mxu0 %v828
    %1116 = vmatprep.subr.bf16.mxu0 0
    %1117 = vmatpush1.bf16.msra.mxu0 %v829
    %1118 = vmatprep.mubr.bf16.mxu0 %v293
    %1119 = vmatmul.mubr.bf16.gmra.mrb[0].mxu0 %v285
    %v1120 = vpop.f32.mrb[0].mxu0
    %v1121 = vadd.f32 %v1081, %v1120
    %v1122 = vpop.f32.mrb[0].mxu0
    %v1123 = vpop.f32.mrb[0].mxu0
    %v1124 = vpop.f32.mrb[0].mxu0
    %1125 = vdwg.mxu0
    %1126 = vmatprep.subr.bf16.mxu0 0
    %1127 = vmatpush1.bf16.msra.mxu0 %v830
    %1128 = vmatprep.subr.bf16.mxu0 0
    %1129 = vmatpush1.bf16.msra.mxu0 %v831
    %1130 = vmatprep.subr.bf16.mxu0 0
    %1131 = vmatpush1.bf16.msra.mxu0 %v832
    %1132 = vmatprep.subr.bf16.mxu0 0
    %1133 = vmatpush1.bf16.msra.mxu0 %v833
    %1134 = vmatprep.subr.bf16.mxu0 0
    %1135 = vmatpush1.bf16.msra.mxu0 %v834
    %1136 = vmatprep.subr.bf16.mxu0 0
    %1137 = vmatpush1.bf16.msra.mxu0 %v835
    %1138 = vmatprep.subr.bf16.mxu0 0
    %1139 = vmatpush1.bf16.msra.mxu0 %v836
    %1140 = vmatprep.subr.bf16.mxu0 0
    %1141 = vmatpush1.bf16.msra.mxu0 %v837
    %1142 = vmatprep.subr.bf16.mxu0 0
    %1143 = vmatpush1.bf16.msra.mxu0 %v838
    %1144 = vmatprep.subr.bf16.mxu0 0
    %1145 = vmatpush1.bf16.msra.mxu0 %v839
    %1146 = vmatprep.subr.bf16.mxu0 0
    %1147 = vmatpush1.bf16.msra.mxu0 %v840
    %1148 = vmatprep.subr.bf16.mxu0 0
    %1149 = vmatpush1.bf16.msra.mxu0 %v841
    %1150 = vmatprep.subr.bf16.mxu0 0
    %1151 = vmatpush1.bf16.msra.mxu0 %v842
    %1152 = vmatprep.subr.bf16.mxu0 0
    %1153 = vmatpush1.bf16.msra.mxu0 %v843
    %1154 = vmatprep.subr.bf16.mxu0 0
    %1155 = vmatpush1.bf16.msra.mxu0 %v844
    %1156 = vmatprep.subr.bf16.mxu0 0
    %1157 = vmatpush1.bf16.msra.mxu0 %v845
    %1158 = vmatprep.mubr.bf16.mxu0 %v294
    %1159 = vmatmul.mubr.bf16.gmra.mrb[0].mxu0 %v292
    %v1160 = vpop.f32.mrb[0].mxu0
    %v1161 = vadd.f32 %v1121, %v1160
    %v1162 = vpop.f32.mrb[0].mxu0
    %v1163 = vpop.f32.mrb[0].mxu0
    %v1164 = vpop.f32.mrb[0].mxu0
    %1165 = vdwg.mxu0
    %1166 = vmatprep.subr.bf16.mxu0 0
    %1167 = vmatpush1.bf16.msra.mxu0 %v846
    %1168 = vmatprep.subr.bf16.mxu0 0
    %1169 = vmatpush1.bf16.msra.mxu0 %v847
    %1170 = vmatprep.subr.bf16.mxu0 0
    %1171 = vmatpush1.bf16.msra.mxu0 %v848
    %1172 = vmatprep.subr.bf16.mxu0 0
    %1173 = vmatpush1.bf16.msra.mxu0 %v849
    %1174 = vmatprep.subr.bf16.mxu0 0
    %1175 = vmatpush1.bf16.msra.mxu0 %v850
    %1176 = vmatprep.subr.bf16.mxu0 0
    %1177 = vmatpush1.bf16.msra.mxu0 %v851
    %1178 = vmatprep.subr.bf16.mxu0 0
    %1179 = vmatpush1.bf16.msra.mxu0 %v852
    %1180 = vmatprep.subr.bf16.mxu0 0
    %1181 = vmatpush1.bf16.msra.mxu0 %v853
    %1182 = vmatprep.subr.bf16.mxu0 0
    %1183 = vmatpush1.bf16.msra.mxu0 %v854
    %1184 = vmatprep.subr.bf16.mxu0 0
    %1185 = vmatpush1.bf16.msra.mxu0 %v855
    %1186 = vmatprep.subr.bf16.mxu0 0
    %1187 = vmatpush1.bf16.msra.mxu0 %v856
    %1188 = vmatprep.subr.bf16.mxu0 0
    %1189 = vmatpush1.bf16.msra.mxu0 %v857
    %1190 = vmatprep.subr.bf16.mxu0 0
    %1191 = vmatpush1.bf16.msra.mxu0 %v858
    %1192 = vmatprep.subr.bf16.mxu0 0
    %1193 = vmatpush1.bf16.msra.mxu0 %v859
    %1194 = vmatprep.subr.bf16.mxu0 0
    %1195 = vmatpush1.bf16.msra.mxu0 %v860
    %1196 = vmatprep.subr.bf16.mxu0 0
    %1197 = vmatpush1.bf16.msra.mxu0 %v861
    %1198 = vmatprep.mubr.bf16.mxu0 %v310
    %1199 = vmatmul.mubr.bf16.gmra.mrb[0].mxu0 %v302
    %v1200 = vpop.f32.mrb[0].mxu0
    %v1201 = vadd.f32 %v1161, %v1200
    %v1202 = vpop.f32.mrb[0].mxu0
    %v1203 = vpop.f32.mrb[0].mxu0
    %v1204 = vpop.f32.mrb[0].mxu0
    %1205 = vdwg.mxu0
    %1206 = vmatprep.subr.bf16.mxu0 0
    %1207 = vmatpush1.bf16.msra.mxu0 %v862
    %1208 = vmatprep.subr.bf16.mxu0 0
    %1209 = vmatpush1.bf16.msra.mxu0 %v863
    %1210 = vmatprep.subr.bf16.mxu0 0
    %1211 = vmatpush1.bf16.msra.mxu0 %v864
    %1212 = vmatprep.subr.bf16.mxu0 0
    %1213 = vmatpush1.bf16.msra.mxu0 %v865
    %1214 = vmatprep.subr.bf16.mxu0 0
    %1215 = vmatpush1.bf16.msra.mxu0 %v866
    %1216 = vmatprep.subr.bf16.mxu0 0
    %1217 = vmatpush1.bf16.msra.mxu0 %v867
    %1218 = vmatprep.subr.bf16.mxu0 0
    %1219 = vmatpush1.bf16.msra.mxu0 %v868
    %1220 = vmatprep.subr.bf16.mxu0 0
    %1221 = vmatpush1.bf16.msra.mxu0 %v869
    %1222 = vmatprep.subr.bf16.mxu0 0
    %1223 = vmatpush1.bf16.msra.mxu0 %v870
    %1224 = vmatprep.subr.bf16.mxu0 0
    %1225 = vmatpush1.bf16.msra.mxu0 %v871
    %1226 = vmatprep.subr.bf16.mxu0 0
    %1227 = vmatpush1.bf16.msra.mxu0 %v872
    %1228 = vmatprep.subr.bf16.mxu0 0
    %1229 = vmatpush1.bf16.msra.mxu0 %v873
    %1230 = vmatprep.subr.bf16.mxu0 0
    %1231 = vmatpush1.bf16.msra.mxu0 %v874
    %1232 = vmatprep.subr.bf16.mxu0 0
    %1233 = vmatpush1.bf16.msra.mxu0 %v875
    %1234 = vmatprep.subr.bf16.mxu0 0
    %1235 = vmatpush1.bf16.msra.mxu0 %v876
    %1236 = vmatprep.subr.bf16.mxu0 0
    %1237 = vmatpush1.bf16.msra.mxu0 %v877
    %1238 = vmatprep.mubr.bf16.mxu0 %v311
    %1239 = vmatmul.mubr.bf16.gmra.mrb[0].mxu0 %v309
    %v1240 = vpop.f32.mrb[0].mxu0
    %v1241 = vadd.f32 %v1201, %v1240
    %v1242 = vpop.f32.mrb[0].mxu0
    %v1243 = vpop.f32.mrb[0].mxu0
    %v1244 = vpop.f32.mrb[0].mxu0
    %1245 = vdwg.mxu0
    %1246 = vmatprep.subr.bf16.mxu0 0
    %1247 = vmatpush1.bf16.msra.mxu0 %v878
    %1248 = vmatprep.subr.bf16.mxu0 0
    %1249 = vmatpush1.bf16.msra.mxu0 %v879
    %1250 = vmatprep.subr.bf16.mxu0 0
    %1251 = vmatpush1.bf16.msra.mxu0 %v880
    %1252 = vmatprep.subr.bf16.mxu0 0
    %1253 = vmatpush1.bf16.msra.mxu0 %v881
    %1254 = vmatprep.subr.bf16.mxu0 0
    %1255 = vmatpush1.bf16.msra.mxu0 %v882
    %1256 = vmatprep.subr.bf16.mxu0 0
    %1257 = vmatpush1.bf16.msra.mxu0 %v883
    %1258 = vmatprep.subr.bf16.mxu0 0
    %1259 = vmatpush1.bf16.msra.mxu0 %v884
    %1260 = vmatprep.subr.bf16.mxu0 0
    %1261 = vmatpush1.bf16.msra.mxu0 %v885
    %1262 = vmatprep.subr.bf16.mxu0 0
    %1263 = vmatpush1.bf16.msra.mxu0 %v886
    %1264 = vmatprep.subr.bf16.mxu0 0
    %1265 = vmatpush1.bf16.msra.mxu0 %v887
    %1266 = vmatprep.subr.bf16.mxu0 0
    %1267 = vmatpush1.bf16.msra.mxu0 %v888
    %1268 = vmatprep.subr.bf16.mxu0 0
    %1269 = vmatpush1.bf16.msra.mxu0 %v889
    %1270 = vmatprep.subr.bf16.mxu0 0
    %1271 = vmatpush1.bf16.msra.mxu0 %v890
    %1272 = vmatprep.subr.bf16.mxu0 0
    %1273 = vmatpush1.bf16.msra.mxu0 %v891
    %1274 = vmatprep.subr.bf16.mxu0 0
    %1275 = vmatpush1.bf16.msra.mxu0 %v892
    %1276 = vmatprep.subr.bf16.mxu0 0
    %1277 = vmatpush1.bf16.msra.mxu0 %v893
    %1278 = vmatprep.mubr.bf16.mxu0 %v319
    %1279 = vmatmul.mubr.bf16.gmra.mrb[0].mxu0 %v318
    %v1280 = vpop.f32.mrb[0].mxu0
    %v1281 = vadd.f32 %v1241, %v1280
    %v1282 = vpop.f32.mrb[0].mxu0
    %v1283 = vpop.f32.mrb[0].mxu0
    %v1284 = vpop.f32.mrb[0].mxu0
    %1285 = vdwg.mxu0
    %v1286 = vld [vmem:[%s3] sm:$0xff]
    %v1287 = vld [vmem:[%s3 + $0x8] sm:$0xff]
    %v1288 = vld [vmem:[%s3 + $0x10] sm:$0xff]
    %v1289 = vld [vmem:[%s3 + $0x18] sm:$0xff]
    %v1290 = vld [vmem:[%s3 + $0x20] sm:$0xff]
    %v1291 = vld [vmem:[%s3 + $0x28] sm:$0xff]
    %v1292 = vld [vmem:[%s3 + $0x30] sm:$0xff]
    %v1293 = vld [vmem:[%s3 + $0x38] sm:$0xff]
    %v1294 = vld [vmem:[%s4] sm:$0x1]
    %v1296 = vlaneseq
    %v1297 = vshrl.u32 %v1296, 7
    %v1298 = vsub.s32 0, %v1297
    %v1299 = vrot.slane %v1294, %v1298
    %vm1301 = vcmask 523264
    %v1303 = vsel %vm1301, %v1281, 0
    %1305 = vmatprep.subr.mxu0 0.0
    %1306 = vmatpush1.msra.mxu0 %v1286
    %1307 = vmatprep.subr.mxu0 0.0
    %1308 = vmatpush1.msra.mxu0 %v1287
    %1309 = vmatprep.subr.mxu0 0.0
    %1310 = vmatpush1.msra.mxu0 %v1288
    %1311 = vmatprep.subr.mxu0 0.0
    %1312 = vmatpush1.msra.mxu0 %v1289
    %1313 = vmatprep.subr.mxu0 0.0
    %1314 = vmatpush1.msra.mxu0 %v1290
    %1315 = vmatprep.subr.mxu0 0.0
    %1316 = vmatpush1.msra.mxu0 %v1291
    %1317 = vmatprep.subr.mxu0 0.0
    %1318 = vmatpush1.msra.mxu0 %v1292
    %1319 = vmatprep.subr.mxu0 0.0
    %1320 = vmatpush1.msra.mxu0 %v1293
    %1321 = vmatprep.subr.mxu0 0.0
    %1322 = vmatpush1.msra.mxu0 0.0
    %1323 = vmatprep.subr.mxu0 0.0
    %1324 = vmatpush1.msra.mxu0 0.0
    %1325 = vmatprep.subr.mxu0 0.0
    %1326 = vmatpush1.msra.mxu0 0.0
    %1327 = vmatprep.subr.mxu0 0.0
    %1328 = vmatpush1.msra.mxu0 0.0
    %1329 = vmatprep.subr.mxu0 0.0
    %1330 = vmatpush1.msra.mxu0 0.0
    %1331 = vmatprep.subr.mxu0 0.0
    %1332 = vmatpush1.msra.mxu0 0.0
    %1333 = vmatprep.subr.mxu0 0.0
    %1334 = vmatpush1.msra.mxu0 0.0
    %1335 = vmatprep.subr.mxu0 0.0
    %1336 = vmatpush1.msra.mxu0 0.0
    %1337 = vmatprep.subr.mxu0 0.0
    %1338 = vmatpush1.msra.mxu0 0.0
    %1339 = vmatprep.subr.mxu0 0.0
    %1340 = vmatpush1.msra.mxu0 0.0
    %1341 = vmatprep.subr.mxu0 0.0
    %1342 = vmatpush1.msra.mxu0 0.0
    %1343 = vmatprep.subr.mxu0 0.0
    %1344 = vmatpush1.msra.mxu0 0.0
    %1345 = vmatprep.subr.mxu0 0.0
    %1346 = vmatpush1.msra.mxu0 0.0
    %1347 = vmatprep.subr.mxu0 0.0
    %1348 = vmatpush1.msra.mxu0 0.0
    %1349 = vmatprep.subr.mxu0 0.0
    %1350 = vmatpush1.msra.mxu0 0.0
    %1351 = vmatprep.subr.mxu0 0.0
    %1352 = vmatpush1.msra.mxu0 0.0
    %1353 = vmatprep.subr.mxu0 0.0
    %1354 = vmatpush1.msra.mxu0 0.0
    %1355 = vmatprep.subr.mxu0 0.0
    %1356 = vmatpush1.msra.mxu0 0.0
    %1357 = vmatprep.subr.mxu0 0.0
    %1358 = vmatpush1.msra.mxu0 0.0
    %1359 = vmatprep.subr.mxu0 0.0
    %1360 = vmatpush1.msra.mxu0 0.0
    %1361 = vmatprep.subr.mxu0 0.0
    %1362 = vmatpush1.msra.mxu0 0.0
    %1363 = vmatprep.subr.mxu0 0.0
    %1364 = vmatpush1.msra.mxu0 0.0
    %1365 = vmatprep.subr.mxu0 0.0
    %1366 = vmatpush1.msra.mxu0 0.0
    %1367 = vmatprep.subr.mxu0 0.0
    %1368 = vmatpush1.msra.mxu0 0.0
    %1369 = vmatprep.mubr.f32.mxu0 0.0
    %1370 = vmatmul.mubr.f32.gmra.mrb[0].mxu0 %v1303
    %v1371 = vpop.f32.mrb[0].mxu0
    %v1372 = vadd.f32 %v1299, %v1371
    %v1373 = vpop.f32.mrb[0].mxu0
    %1374 = vdwg.mxu0
    %1376 = vrot.lane.b32.xlu0 %v1372, 64
    %v1377 = vpop.permute.xlu0 %1376
    %v1379 = vsel %vm1301, %v1281, %v1377
    %vm1380 = vcmask 916480
    %v1381 = vsel %vm1380, %v1379, 0.0
    %1382 = vst [vmem:[#allocation2] sm:$0xf] %v1381
    // Predicated region
    $region22: #{tpu_custom_call.1} parent=1 // pred_check
      _
    $region23: #{tpu_custom_call.1} parent=1 // pred_check_branch
      %1384 = sbr.rel (0) target = $region25
    $region24: #{tpu_custom_call.1} parent=1 // pred_region
      %s1386 = ssub.s32 64, 64
      %1387 = vsyncadd [#allocation3], %s1386
      %s1389 = sshll.u32 [#allocation2], 4
      %s1390 = int_to_ptr.vmem [resolvable:$true] %s1389
      %1392 = dma.vmem_to_hbm [thread:$0]  %s1390, 64, %s5, [#allocation3]
    $region25: #{tpu_custom_call.1} parent=1 // pred_fallthru
      _
    // Predicated region
    $region26: #{tpu_custom_call.1} parent=1 // pred_check
      _
    $region27: #{tpu_custom_call.1} parent=1 // pred_check_branch
      %1394 = sbr.rel (0) target = $region29
    $region28: #{tpu_custom_call.1} parent=1 // pred_region
      %1395 = dma.done [#allocation3], 64
    $region29: #{tpu_custom_call.1} parent=1 // pred_fallthru
      _
    %1396 = vsyncpa [#allocation3], 1

</llo_original>
